<compile_context>
chip_gen: v6e
topology: v6e:2x2x1
jax: 0.10.0
libtpu: 0.0.40
codegen_flags: <defaults>
</compile_context>

<pallas_src>
import functools

import jax
import jax.numpy as jnp
from jax import lax
from jax.experimental import pallas as pl
from jax.experimental.pallas import tpu as pltpu

# ---- LSNNParameters defaults (norse) -------------------------------------
TAU_SYN_INV = 1.0 / 5e-3
TAU_MEM_INV = 1.0 / 1e-2
TAU_ADAPT_INV = 1.0 / 700.0
V_LEAK = 0.0
V_TH = 1.0
V_RESET = 0.0
BETA = 1.8
DT = 0.001

LANE = 128
SUBLANE = 8


def _round_up(x, m):
    return ((x + m - 1) // m) * m


def _pad_last2(a, rows, cols):
    pr = rows - a.shape[-2]
    pc = cols - a.shape[-1]
    if pr == 0 and pc == 0:
        return a
    pad = [(0, 0)] * (a.ndim - 2) + [(0, pr), (0, pc)]
    return jnp.pad(a, pad)


def _pick_time_block(T, max_tt=32):
    """Largest divisor of T that is <= max_tt (no time padding / no commit guards)."""
    tt = 1
    for d in range(1, min(T, max_tt) + 1):
        if T % d == 0:
            tt = d
    return tt


def _lsnn_seq_kernel(tt_steps,
                     x_ref, z0_ref, v0_ref, i0_ref, b0_ref, w_in_ref, w_rec_ref,
                     zs_ref, zT_ref, vT_ref, iT_ref, bT_ref,
                     z_sc, v_sc, i_sc, b_sc):
    # NOTE: correctness relies on the time axis (axis 1) being the innermost,
    # sequentially iterated ("arbitrary") grid axis — the state carry lives in the
    # per-core VMEM scratch across that axis.
    tblk = pl.program_id(1)

    # Load the incoming state into VMEM scratch at the first time block of each batch
    # block; afterwards the state never leaves VMEM until the last time block.
    @pl.when(tblk == 0)
    def _():
        z_sc[...] = z0_ref[...].astype(jnp.float32)
        v_sc[...] = v0_ref[...].astype(jnp.float32)
        i_sc[...] = i0_ref[...].astype(jnp.float32)
        b_sc[...] = b0_ref[...].astype(jnp.float32)

    # Folded decay constants (Python floats -> folded at compile time, f32 math on VPU).
    a_mem = 1.0 - DT * TAU_MEM_INV
    c_mem = DT * TAU_MEM_INV
    leak = DT * TAU_MEM_INV * V_LEAK
    a_syn = 1.0 - DT * TAU_SYN_INV
    a_adp = 1.0 - DT * TAU_ADAPT_INV
    c_adp = DT * TAU_ADAPT_INV * V_TH
    b_jump = TAU_ADAPT_INV * BETA

    cdtype = w_in_ref.dtype  # matmul operand dtype (bf16 if bf16 weights were passed)

    def step(s, carry):
        z, v, i, b = carry

        # Euler decays (f32 elementwise)
        v_dec = v * a_mem + i * c_mem + leak
        i_dec = i * a_syn
        b_dec = b * a_adp + c_adp

        # hard Heaviside (strict >, matching norse's forward); compare kept in f32
        spike = v_dec > b_dec
        z_new = spike.astype(jnp.float32)

        # reset + adaptation jump (reuse the boolean mask)
        v_new = jnp.where(spike, V_RESET, v_dec)
        b_new = jnp.where(spike, b_dec + b_jump, b_dec)

        # Current jump: two dots sharing one f32 accumulation chain.
        # NOTE: uses the PREVIOUS z (state.z), as in lsnn_step.
        cur = (jnp.dot(x_ref[s].astype(cdtype), w_in_ref[...],
                       preferred_element_type=jnp.float32)
               + jnp.dot(z.astype(cdtype), w_rec_ref[...],
                         preferred_element_type=jnp.float32))
        i_new = i_dec + cur

        # per-step spike output (lane-dense: H padded to a multiple of 128)
        zs_ref[s] = z_new.astype(zs_ref.dtype)
        return z_new, v_new, i_new, b_new

    z, v, i, b = lax.fori_loop(
        0, tt_steps, step,
        (z_sc[...], v_sc[...], i_sc[...], b_sc[...]),
        unroll=True)

    # commit the carried state to VMEM scratch for the next time block
    z_sc[...] = z
    v_sc[...] = v
    i_sc[...] = i
    b_sc[...] = b

    # final state leaves VMEM only once, at the last time block
    @pl.when(tblk == pl.num_programs(1) - 1)
    def _():
        zT_ref[...] = z.astype(zT_ref.dtype)
        vT_ref[...] = v.astype(vT_ref.dtype)
        iT_ref[...] = i.astype(iT_ref.dtype)
        bT_ref[...] = b.astype(bT_ref.dtype)


def lsnn_sequence(xs, state, input_weights, recurrent_weights, *,
                  matmul_dtype=None, max_time_block=32):
    """Run T LSNN Euler steps in a single pallas_call (state resident in VMEM).

    xs:                (T, B, input_features) spikes
    state:             tuple (z, v, i, b), each (B, output_features)
    input_weights:     (output_features, input_features)   [PyTorch nn.Linear layout]
    recurrent_weights: (output_features, output_features)
    matmul_dtype:      dtype for the MXU operands (default: xs.dtype; bf16 is lossless
                       for the {0,1} spike operands and 2-4x faster).
    returns: (zs, (z_T, v_T, i_T, b_T)) with zs: (T, B, output_features)
    """
    T, B, n_in = xs.shape
    H = input_weights.shape[0]
    dtype = xs.dtype
    w_dtype = jnp.dtype(matmul_dtype) if matmul_dtype is not None else jnp.dtype(dtype)

    n_in_p = _round_up(n_in, LANE)
    H_p = _round_up(H, LANE)

    # Batch tile: <=128 rows so large B gives num_bb >= 2 (megacore shards the
    # "parallel" batch axis on v7x); small B stays a single sublane-aligned block.
    if B <= 128:
        tb = _round_up(B, SUBLANE)
    else:
        tb = 128
    B_p = _round_up(B, tb)
    num_bb = B_p // tb

    # Time block: TT steps per grid iteration (amortizes per-grid-step overhead).
    TT = _pick_time_block(T, max_time_block)
    num_tt = T // TT

    # Hoisted weight prep: transpose + zero-pad ONCE per call (amortized over T).
    w_in_p = _pad_last2(jnp.asarray(input_weights, w_dtype).T, n_in_p, H_p)
    w_rec_p = _pad_last2(jnp.asarray(recurrent_weights, w_dtype).T, H_p, H_p)

    xs_p = _pad_last2(jnp.asarray(xs, dtype), B_p, n_in_p)
    z0, v0, i0, b0 = (_pad_last2(jnp.asarray(s, dtype), B_p, H_p) for s in state)

    state_spec = pl.BlockSpec((tb, H_p), lambda bb, t: (bb, 0))
    out_state_sd = jax.ShapeDtypeStruct((B_p, H_p), dtype)

    grid_spec = pltpu.PrefetchScalarGridSpec(
        num_scalar_prefetch=0,
        grid=(num_bb, num_tt),
        in_specs=[
            pl.BlockSpec((TT, tb, n_in_p), lambda bb, t: (t, bb, 0)),  # x time block
            state_spec, state_spec, state_spec, state_spec,            # z0, v0, i0, b0
            pl.BlockSpec((n_in_p, H_p), lambda bb, t: (0, 0)),         # W_in^T
            pl.BlockSpec((H_p, H_p), lambda bb, t: (0, 0)),            # W_rec^T
        ],
        out_specs=(
            pl.BlockSpec((TT, tb, H_p), lambda bb, t: (t, bb, 0)),     # zs time block
            state_spec, state_spec, state_spec, state_spec,            # final state
        ),
        scratch_shapes=[
            pltpu.VMEM((tb, H_p), jnp.float32),   # z carry
            pltpu.VMEM((tb, H_p), jnp.float32),   # v carry
            pltpu.VMEM((tb, H_p), jnp.float32),   # i carry
            pltpu.VMEM((tb, H_p), jnp.float32),   # b carry
        ],
    )

    # Explicit VMEM budget (double-buffered x / zs / state blocks + weights + scratch),
    # mainly for v5e's 16 MiB scoped default when scaling tb / H_p.
    itm = jnp.dtype(dtype).itemsize
    witm = w_dtype.itemsize
    vmem_est = (2 * TT * tb * n_in_p * itm
                + 2 * TT * tb * H_p * itm
                + 2 * (n_in_p + H_p) * H_p * witm
                + 8 * 2 * tb * H_p * itm
                + 4 * tb * H_p * 4)
    vmem_limit = int(min(100 * 2**20, max(32 * 2**20, 2 * vmem_est)))

    zs_p, zT, vT, iT, bT = pl.pallas_call(
        functools.partial(_lsnn_seq_kernel, TT),
        out_shape=(jax.ShapeDtypeStruct((T, B_p, H_p), dtype),
                   out_state_sd, out_state_sd, out_state_sd, out_state_sd),
        grid_spec=grid_spec,
        compiler_params=pltpu.CompilerParams(
            dimension_semantics=("parallel", "arbitrary"),
            vmem_limit_bytes=vmem_limit),
    )(xs_p, z0, v0, i0, b0, w_in_p, w_rec_p)

    zs = zs_p[:, :B, :H]
    new_state = tuple(s[:B, :H] for s in (zT, vT, iT, bT))
    return zs, new_state


def lsnn_cell(x, state, input_weights, recurrent_weights):
    """One LSNN Euler step (== LSNNCell.forward). x: (B, n_in); state: (z, v, i, b)."""
    zs, new_state = lsnn_sequence(x[None], state, input_weights, recurrent_weights)
    return zs[0], new_state


# ---------------------------------------------------------------------------
# Pure-JAX references (mirror norse lsnn_step) for correctness checking.
# ---------------------------------------------------------------------------
def lsnn_cell_reference(x, state, input_weights, recurrent_weights):
    z, v, i, b = state
    v_dec = v + DT * TAU_MEM_INV * ((V_LEAK - v) + i)
    i_dec = i + (-DT * TAU_SYN_INV) * i
    b_dec = b + DT * TAU_ADAPT_INV * (V_TH - b)
    z_new = (v_dec - b_dec > 0.0).astype(x.dtype)
    v_new = (1.0 - z_new) * v_dec + z_new * V_RESET
    i_new = i_dec + x @ input_weights.T + z @ recurrent_weights.T
    b_new = b_dec + z_new * (TAU_ADAPT_INV * BETA)
    return z_new, (z_new, v_new, i_new, b_new)


def lsnn_sequence_reference(xs, state, input_weights, recurrent_weights):
    zs = []
    for t in range(xs.shape[0]):
        z, state = lsnn_cell_reference(xs[t], state, input_weights, recurrent_weights)
        zs.append(z)
    return jnp.stack(zs), state


if __name__ == "__main__":
    B = 8
    INPUT_FEATURES = 32
    OUTPUT_FEATURES = 32
    T = 8
    dtype = jnp.float32

    key = jax.random.PRNGKey(0)
    k_win, k_wrec, k_x, k_v, k_i, k_b, k_z = jax.random.split(key, 7)

    # deterministic parameter init mirroring LSNNCell.__init__
    input_weights = (jax.random.normal(k_win, (OUTPUT_FEATURES, INPUT_FEATURES), dtype)
                     / jnp.sqrt(jnp.asarray(INPUT_FEATURES, dtype)))
    recurrent_weights = jax.random.normal(k_wrec, (OUTPUT_FEATURES, OUTPUT_FEATURES), dtype)

    # input spike train and a non-trivial initial state
    xs = (jax.random.uniform(k_x, (T, B, INPUT_FEATURES), dtype) > 0.7).astype(dtype)
    state0 = (
        (jax.random.uniform(k_z, (B, OUTPUT_FEATURES), dtype) > 0.5).astype(dtype),  # z
        jax.random.normal(k_v, (B, OUTPUT_FEATURES), dtype),                          # v
        jax.random.normal(k_i, (B, OUTPUT_FEATURES), dtype),                          # i
        jax.random.uniform(k_b, (B, OUTPUT_FEATURES), dtype),                         # b
    )

    # --- single-step check (the module's forward) ---------------------------
    z1, st1 = jax.block_until_ready(
        lsnn_cell(xs[0], state0, input_weights, recurrent_weights))
    z1_ref, st1_ref = lsnn_cell_reference(xs[0], state0, input_weights, recurrent_weights)
    for got, want in zip((z1,) + tuple(st1), (z1_ref,) + tuple(st1_ref)):
        assert got.shape == want.shape and got.dtype == want.dtype
        assert jnp.allclose(got, want, atol=1e-4, rtol=1e-4), "single-step mismatch"

    # --- fused T-step sequence check ----------------------------------------
    zs, stT = jax.block_until_ready(
        lsnn_sequence(xs, state0, input_weights, recurrent_weights))
    zs_ref, stT_ref = lsnn_sequence_reference(xs, state0, input_weights, recurrent_weights)
    assert zs.shape == (T, B, OUTPUT_FEATURES)
    for got, want in zip((zs,) + tuple(stT), (zs_ref,) + tuple(stT_ref)):
        assert got.shape == want.shape and got.dtype == want.dtype
        assert jnp.allclose(got, want, atol=1e-4, rtol=1e-4), "sequence mismatch"

    print("KERNEL_OK")
</pallas_src>

<mosaic_0001>
module attributes {stable_mosaic.version = 11 : i64} {
  func.func @_lsnn_seq_kernel(%arg0: i32, %arg1: i32, %arg2: memref<1x8x128xf32, #tpu.memory_space<vmem>>, %arg3: memref<8x128xf32, #tpu.memory_space<vmem>>, %arg4: memref<8x128xf32, #tpu.memory_space<vmem>>, %arg5: memref<8x128xf32, #tpu.memory_space<vmem>>, %arg6: memref<8x128xf32, #tpu.memory_space<vmem>>, %arg7: memref<128x128xf32, #tpu.memory_space<vmem>>, %arg8: memref<128x128xf32, #tpu.memory_space<vmem>>, %arg9: memref<1x8x128xf32, #tpu.memory_space<vmem>>, %arg10: memref<8x128xf32, #tpu.memory_space<vmem>>, %arg11: memref<8x128xf32, #tpu.memory_space<vmem>>, %arg12: memref<8x128xf32, #tpu.memory_space<vmem>>, %arg13: memref<8x128xf32, #tpu.memory_space<vmem>>, %arg14: memref<8x128xf32, #tpu.memory_space<vmem>>, %arg15: memref<8x128xf32, #tpu.memory_space<vmem>>, %arg16: memref<8x128xf32, #tpu.memory_space<vmem>>, %arg17: memref<8x128xf32, #tpu.memory_space<vmem>>) attributes {dimension_semantics = [#tpu.dimension_semantics<parallel>, #tpu.dimension_semantics<arbitrary>], iteration_bounds = array<i64: 1, 1>, scalar_prefetch = 0 : i64, scratch_operands = 4 : i64, tpu.core_type = #tpu.core_type<tc>, window_params = [{transform_indices = @transform_0, window_bounds = array<i64: 1, 8, 128>}, {transform_indices = @transform_1, window_bounds = array<i64: 8, 128>}, {transform_indices = @transform_2, window_bounds = array<i64: 8, 128>}, {transform_indices = @transform_3, window_bounds = array<i64: 8, 128>}, {transform_indices = @transform_4, window_bounds = array<i64: 8, 128>}, {pipeline_mode = #tpu.pipeline_mode<synchronous>, transform_indices = @transform_5, window_bounds = array<i64: 128, 128>}, {pipeline_mode = #tpu.pipeline_mode<synchronous>, transform_indices = @transform_6, window_bounds = array<i64: 128, 128>}, {transform_indices = @transform_7, window_bounds = array<i64: 1, 8, 128>}, {transform_indices = @transform_8, window_bounds = array<i64: 8, 128>}, {transform_indices = @transform_9, window_bounds = array<i64: 8, 128>}, {transform_indices = @transform_10, window_bounds = array<i64: 8, 128>}, {transform_indices = @transform_11, window_bounds = array<i64: 8, 128>}]} {
    %c0_i32 = arith.constant 0 : i32
    %0 = arith.cmpi eq, %arg1, %c0_i32 : i32
    %1 = arith.extui %0 : i1 to i32
    %c0_i32_0 = arith.constant 0 : i32
    %2 = arith.cmpi ne, %1, %c0_i32_0 : i32
    scf.if %2 {
      %c0_36 = arith.constant 0 : index
      %c0_37 = arith.constant 0 : index
      %48 = vector.load %arg3[%c0_36, %c0_37] : memref<8x128xf32, #tpu.memory_space<vmem>>, vector<8x128xf32>
      %c0_38 = arith.constant 0 : index
      %c0_39 = arith.constant 0 : index
      %49 = vector.load %arg14[%c0_38, %c0_39] : memref<8x128xf32, #tpu.memory_space<vmem>>, vector<8x128xf32>
      tpu.vector_store %arg14[%c0_38, %c0_39], %48 {strides = array<i32>} : memref<8x128xf32, #tpu.memory_space<vmem>>, vector<8x128xf32>,
      %c0_40 = arith.constant 0 : index
      %c0_41 = arith.constant 0 : index
      %50 = vector.load %arg4[%c0_40, %c0_41] : memref<8x128xf32, #tpu.memory_space<vmem>>, vector<8x128xf32>
      %c0_42 = arith.constant 0 : index
      %c0_43 = arith.constant 0 : index
      %51 = vector.load %arg15[%c0_42, %c0_43] : memref<8x128xf32, #tpu.memory_space<vmem>>, vector<8x128xf32>
      tpu.vector_store %arg15[%c0_42, %c0_43], %50 {strides = array<i32>} : memref<8x128xf32, #tpu.memory_space<vmem>>, vector<8x128xf32>,
      %c0_44 = arith.constant 0 : index
      %c0_45 = arith.constant 0 : index
      %52 = vector.load %arg5[%c0_44, %c0_45] : memref<8x128xf32, #tpu.memory_space<vmem>>, vector<8x128xf32>
      %c0_46 = arith.constant 0 : index
      %c0_47 = arith.constant 0 : index
      %53 = vector.load %arg16[%c0_46, %c0_47] : memref<8x128xf32, #tpu.memory_space<vmem>>, vector<8x128xf32>
      tpu.vector_store %arg16[%c0_46, %c0_47], %52 {strides = array<i32>} : memref<8x128xf32, #tpu.memory_space<vmem>>, vector<8x128xf32>,
      %c0_48 = arith.constant 0 : index
      %c0_49 = arith.constant 0 : index
      %54 = vector.load %arg6[%c0_48, %c0_49] : memref<8x128xf32, #tpu.memory_space<vmem>>, vector<8x128xf32>
      %c0_50 = arith.constant 0 : index
      %c0_51 = arith.constant 0 : index
      %55 = vector.load %arg17[%c0_50, %c0_51] : memref<8x128xf32, #tpu.memory_space<vmem>>, vector<8x128xf32>
      tpu.vector_store %arg17[%c0_50, %c0_51], %54 {strides = array<i32>} : memref<8x128xf32, #tpu.memory_space<vmem>>, vector<8x128xf32>,
    } else {
    }
    %c0 = arith.constant 0 : index
    %c0_1 = arith.constant 0 : index
    %3 = vector.load %arg14[%c0, %c0_1] : memref<8x128xf32, #tpu.memory_space<vmem>>, vector<8x128xf32>
    %c0_2 = arith.constant 0 : index
    %c0_3 = arith.constant 0 : index
    %4 = vector.load %arg15[%c0_2, %c0_3] : memref<8x128xf32, #tpu.memory_space<vmem>>, vector<8x128xf32>
    %c0_4 = arith.constant 0 : index
    %c0_5 = arith.constant 0 : index
    %5 = vector.load %arg16[%c0_4, %c0_5] : memref<8x128xf32, #tpu.memory_space<vmem>>, vector<8x128xf32>
    %c0_6 = arith.constant 0 : index
    %c0_7 = arith.constant 0 : index
    %6 = vector.load %arg17[%c0_6, %c0_7] : memref<8x128xf32, #tpu.memory_space<vmem>>, vector<8x128xf32>
    %c0_i32_8 = arith.constant 0 : i32
    %cst = arith.constant 0.899999976 : f32
    %7 = vector.broadcast %cst : f32 to vector<8x128xf32>
    %8 = arith.mulf %4, %7 : vector<8x128xf32>
    %cst_9 = arith.constant 1.000000e-01 : f32
    %9 = vector.broadcast %cst_9 : f32 to vector<8x128xf32>
    %10 = arith.mulf %5, %9 : vector<8x128xf32>
    %11 = arith.addf %8, %10 : vector<8x128xf32>
    %cst_10 = arith.constant 0.000000e+00 : f32
    %12 = vector.broadcast %cst_10 : f32 to vector<8x128xf32>
    %13 = arith.addf %11, %12 : vector<8x128xf32>
    %cst_11 = arith.constant 8.000000e-01 : f32
    %14 = vector.broadcast %cst_11 : f32 to vector<8x128xf32>
    %15 = arith.mulf %5, %14 : vector<8x128xf32>
    %cst_12 = arith.constant 0.999998569 : f32
    %16 = vector.broadcast %cst_12 : f32 to vector<8x128xf32>
    %17 = arith.mulf %6, %16 : vector<8x128xf32>
    %cst_13 = arith.constant 1.42857141E-6 : f32
    %18 = vector.broadcast %cst_13 : f32 to vector<8x128xf32>
    %19 = arith.addf %17, %18 : vector<8x128xf32>
    %20 = arith.cmpf ogt, %13, %19 : vector<8x128xf32>
    %21 = arith.extui %20 : vector<8x128xi1> to vector<8x128xi32>
    %22 = arith.sitofp %21 : vector<8x128xi32> to vector<8x128xf32>
    %cst_14 = arith.constant 0.000000e+00 : f32
    %23 = vector.broadcast %cst_14 : f32 to vector<8x128xf32>
    %24 = arith.select %20, %23, %13 : vector<8x128xi1>, vector<8x128xf32>
    %cst_15 = arith.constant 0.00257142866 : f32
    %25 = vector.broadcast %cst_15 : f32 to vector<8x128xf32>
    %26 = arith.addf %19, %25 : vector<8x128xf32>
    %27 = arith.select %20, %26, %19 : vector<8x128xi1>, vector<8x128xf32>
    %28 = arith.index_cast %c0_i32_8 : i32 to index
    %c0_16 = arith.constant 0 : index
    %c0_17 = arith.constant 0 : index
    %29 = vector.load %arg2[%28, %c0_16, %c0_17] : memref<1x8x128xf32, #tpu.memory_space<vmem>>, vector<1x8x128xf32>
    %30 = vector.shape_cast %29 : vector<1x8x128xf32> to vector<8x128xf32>
    %c0_18 = arith.constant 0 : index
    %c0_19 = arith.constant 0 : index
    %31 = vector.load %arg7[%c0_18, %c0_19] : memref<128x128xf32, #tpu.memory_space<vmem>>, vector<128x128xf32>
    %cst_20 = arith.constant dense<0.000000e+00> : vector<8x128xf32>
    %32 = tpu.matmul %30, %31, %cst_20 {dimension_numbers = #tpu.dot_dimension_numbers<[1], [0], [0], [1], [0, 0, 1, 1], [], []>} : vector<8x128xf32>, vector<128x128xf32>, vector<8x128xf32> -> vector<8x128xf32>
    %c0_21 = arith.constant 0 : index
    %c0_22 = arith.constant 0 : index
    %33 = vector.load %arg8[%c0_21, %c0_22] : memref<128x128xf32, #tpu.memory_space<vmem>>, vector<128x128xf32>
    %cst_23 = arith.constant dense<0.000000e+00> : vector<8x128xf32>
    %34 = tpu.matmul %3, %33, %cst_23 {dimension_numbers = #tpu.dot_dimension_numbers<[1], [0], [0], [1], [0, 0, 1, 1], [], []>} : vector<8x128xf32>, vector<128x128xf32>, vector<8x128xf32> -> vector<8x128xf32>
    %35 = arith.addf %32, %34 : vector<8x128xf32>
    %36 = arith.addf %15, %35 : vector<8x128xf32>
    %37 = arith.index_cast %c0_i32_8 : i32 to index
    %c0_24 = arith.constant 0 : index
    %c0_25 = arith.constant 0 : index
    %38 = vector.load %arg9[%37, %c0_24, %c0_25] : memref<1x8x128xf32, #tpu.memory_space<vmem>>, vector<1x8x128xf32>
    %39 = vector.shape_cast %38 : vector<1x8x128xf32> to vector<8x128xf32>
    %40 = vector.shape_cast %22 : vector<8x128xf32> to vector<1x8x128xf32>
    tpu.vector_store %arg9[%37, %c0_24, %c0_25], %40 {strides = array<i32>} : memref<1x8x128xf32, #tpu.memory_space<vmem>>, vector<1x8x128xf32>,
    %c1_i32 = arith.constant 1 : i32
    %c0_26 = arith.constant 0 : index
    %c0_27 = arith.constant 0 : index
    %41 = vector.load %arg14[%c0_26, %c0_27] : memref<8x128xf32, #tpu.memory_space<vmem>>, vector<8x128xf32>
    tpu.vector_store %arg14[%c0_26, %c0_27], %22 {strides = array<i32>} : memref<8x128xf32, #tpu.memory_space<vmem>>, vector<8x128xf32>,
    %c0_28 = arith.constant 0 : index
    %c0_29 = arith.constant 0 : index
    %42 = vector.load %arg15[%c0_28, %c0_29] : memref<8x128xf32, #tpu.memory_space<vmem>>, vector<8x128xf32>
    tpu.vector_store %arg15[%c0_28, %c0_29], %24 {strides = array<i32>} : memref<8x128xf32, #tpu.memory_space<vmem>>, vector<8x128xf32>,
    %c0_30 = arith.constant 0 : index
    %c0_31 = arith.constant 0 : index
    %43 = vector.load %arg16[%c0_30, %c0_31] : memref<8x128xf32, #tpu.memory_space<vmem>>, vector<8x128xf32>
    tpu.vector_store %arg16[%c0_30, %c0_31], %36 {strides = array<i32>} : memref<8x128xf32, #tpu.memory_space<vmem>>, vector<8x128xf32>,
    %c0_32 = arith.constant 0 : index
    %c0_33 = arith.constant 0 : index
    %44 = vector.load %arg17[%c0_32, %c0_33] : memref<8x128xf32, #tpu.memory_space<vmem>>, vector<8x128xf32>
    tpu.vector_store %arg17[%c0_32, %c0_33], %27 {strides = array<i32>} : memref<8x128xf32, #tpu.memory_space<vmem>>, vector<8x128xf32>,
    %c0_i32_34 = arith.constant 0 : i32
    %45 = arith.cmpi eq, %arg1, %c0_i32_34 : i32
    %46 = arith.extui %45 : i1 to i32
    %c0_i32_35 = arith.constant 0 : i32
    %47 = arith.cmpi ne, %46, %c0_i32_35 : i32
    scf.if %47 {
      %c0_36 = arith.constant 0 : index
      %c0_37 = arith.constant 0 : index
      %48 = vector.load %arg10[%c0_36, %c0_37] : memref<8x128xf32, #tpu.memory_space<vmem>>, vector<8x128xf32>
      tpu.vector_store %arg10[%c0_36, %c0_37], %22 {strides = array<i32>} : memref<8x128xf32, #tpu.memory_space<vmem>>, vector<8x128xf32>,
      %c0_38 = arith.constant 0 : index
      %c0_39 = arith.constant 0 : index
      %49 = vector.load %arg11[%c0_38, %c0_39] : memref<8x128xf32, #tpu.memory_space<vmem>>, vector<8x128xf32>
      tpu.vector_store %arg11[%c0_38, %c0_39], %24 {strides = array<i32>} : memref<8x128xf32, #tpu.memory_space<vmem>>, vector<8x128xf32>,
      %c0_40 = arith.constant 0 : index
      %c0_41 = arith.constant 0 : index
      %50 = vector.load %arg12[%c0_40, %c0_41] : memref<8x128xf32, #tpu.memory_space<vmem>>, vector<8x128xf32>
      tpu.vector_store %arg12[%c0_40, %c0_41], %36 {strides = array<i32>} : memref<8x128xf32, #tpu.memory_space<vmem>>, vector<8x128xf32>,
      %c0_42 = arith.constant 0 : index
      %c0_43 = arith.constant 0 : index
      %51 = vector.load %arg13[%c0_42, %c0_43] : memref<8x128xf32, #tpu.memory_space<vmem>>, vector<8x128xf32>
      tpu.vector_store %arg13[%c0_42, %c0_43], %27 {strides = array<i32>} : memref<8x128xf32, #tpu.memory_space<vmem>>, vector<8x128xf32>,
    } else {
    }
    return
  }
  func.func @transform_0(%arg0: i32, %arg1: i32) -> (i32, i32, i32) {
    %c0_i32 = arith.constant 0 : i32
    %c0_i32_0 = arith.constant 0 : i32
    return %arg1, %arg0, %c0_i32 : i32, i32, i32
  }
  func.func @transform_1(%arg0: i32, %arg1: i32) -> (i32, i32) {
    %c0_i32 = arith.constant 0 : i32
    %c0_i32_0 = arith.constant 0 : i32
    return %arg0, %c0_i32 : i32, i32
  }
  func.func @transform_2(%arg0: i32, %arg1: i32) -> (i32, i32) {
    %c0_i32 = arith.constant 0 : i32
    %c0_i32_0 = arith.constant 0 : i32
    return %arg0, %c0_i32 : i32, i32
  }
  func.func @transform_3(%arg0: i32, %arg1: i32) -> (i32, i32) {
    %c0_i32 = arith.constant 0 : i32
    %c0_i32_0 = arith.constant 0 : i32
    return %arg0, %c0_i32 : i32, i32
  }
  func.func @transform_4(%arg0: i32, %arg1: i32) -> (i32, i32) {
    %c0_i32 = arith.constant 0 : i32
    %c0_i32_0 = arith.constant 0 : i32
    return %arg0, %c0_i32 : i32, i32
  }
  func.func @transform_5(%arg0: i32, %arg1: i32) -> (i32, i32) {
    %c0_i32 = arith.constant 0 : i32
    %c0_i32_0 = arith.constant 0 : i32
    %c0_i32_1 = arith.constant 0 : i32
    return %c0_i32, %c0_i32_0 : i32, i32
  }
  func.func @transform_6(%arg0: i32, %arg1: i32) -> (i32, i32) {
    %c0_i32 = arith.constant 0 : i32
    %c0_i32_0 = arith.constant 0 : i32
    %c0_i32_1 = arith.constant 0 : i32
    return %c0_i32, %c0_i32_0 : i32, i32
  }
  func.func @transform_7(%arg0: i32, %arg1: i32) -> (i32, i32, i32) {
    %c0_i32 = arith.constant 0 : i32
    %c0_i32_0 = arith.constant 0 : i32
    return %arg1, %arg0, %c0_i32 : i32, i32, i32
  }
  func.func @transform_8(%arg0: i32, %arg1: i32) -> (i32, i32) {
    %c0_i32 = arith.constant 0 : i32
    %c0_i32_0 = arith.constant 0 : i32
    return %arg0, %c0_i32 : i32, i32
  }
  func.func @transform_9(%arg0: i32, %arg1: i32) -> (i32, i32) {
    %c0_i32 = arith.constant 0 : i32
    %c0_i32_0 = arith.constant 0 : i32
    return %arg0, %c0_i32 : i32, i32
  }
  func.func @transform_10(%arg0: i32, %arg1: i32) -> (i32, i32) {
    %c0_i32 = arith.constant 0 : i32
    %c0_i32_0 = arith.constant 0 : i32
    return %arg0, %c0_i32 : i32, i32
  }
  func.func @transform_11(%arg0: i32, %arg1: i32) -> (i32, i32) {
    %c0_i32 = arith.constant 0 : i32
    %c0_i32_0 = arith.constant 0 : i32
    return %arg0, %c0_i32 : i32, i32
  }
}

</mosaic_0001>

<llo_original>
// kernel: tpu_custom_call.1
$region0: #{tpu_custom_call.1}
  #allocation0 [shape = 'u32[]', space=smem, size = 0x4, offset = 0x4, fixed_abs, tag = 'smem constant byte address 0x4 - core index']
  #allocation1 [shape = 'u32[144,128]{1,0:T(1,128)}', space=vmem, size = 0x12000, scoped, tag = 'internal scratch']
  #allocation2 [shape = 'f32[8,128]{1,0:T(8,128)}', space=vmem, size = 0x1000, scoped, tag = 'scratch operand']
  #allocation3 [shape = 'f32[8,128]{1,0:T(8,128)}', space=vmem, size = 0x1000, scoped, tag = 'scratch operand']
  #allocation4 [shape = 'f32[8,128]{1,0:T(8,128)}', space=vmem, size = 0x1000, scoped, tag = 'scratch operand']
  #allocation5 [shape = 'f32[8,128]{1,0:T(8,128)}', space=vmem, size = 0x1000, scoped, tag = 'scratch operand']
  %s0 = inlined_call_operand.hbm [shape: f32[1,8,128], index: 0, kind: input, shape index: {}]
  %s1 = inlined_call_operand.hbm [shape: f32[8,128], index: 1, kind: input, shape index: {}]
  %s2 = inlined_call_operand.hbm [shape: f32[8,128], index: 2, kind: input, shape index: {}]
  %s3 = inlined_call_operand.hbm [shape: f32[8,128], index: 3, kind: input, shape index: {}]
  %s4 = inlined_call_operand.hbm [shape: f32[8,128], index: 4, kind: input, shape index: {}]
  %s5 = inlined_call_operand.hbm [shape: f32[128,128], index: 5, kind: input, shape index: {}]
  %s6 = inlined_call_operand.hbm [shape: f32[128,128], index: 6, kind: input, shape index: {}]
  %s7 = inlined_call_operand.hbm [shape: f32[1,8,128], index: 7, kind: output, shape index: {0}]
  %s8 = inlined_call_operand.hbm [shape: f32[8,128], index: 8, kind: output, shape index: {1}]
  %s9 = inlined_call_operand.hbm [shape: f32[8,128], index: 9, kind: output, shape index: {2}]
  %s10 = inlined_call_operand.hbm [shape: f32[8,128], index: 10, kind: output, shape index: {3}]
  %s11 = inlined_call_operand.hbm [shape: f32[8,128], index: 11, kind: output, shape index: {4}]
  %12 = xla_tuple %s7, %s8, %s9, %s10, %s11
  %s13 = sld [smem:[#allocation0]]
  $region106: #{tpu_custom_call.1} parent=0
    _
  %s15 = ssub.s32 1, %s13
  %s16 = scalar_select 0, %s15, %s13
  $region1: #{tpu_custom_call.1} parent=0
    #allocation6 [shape = 'u8[4096]{0}', space=vmem, size = 0x1000, scoped, tag = 'input window, operand 0, single buffered']
    #allocation7 [shape = 's32[1]{0}', space=sflag, size = 0x4, scoped, tag = 'scoped memory for tpu_custom_call.1']
    #allocation8 [shape = 's32[1]{0}', space=sflag, size = 0x4, scoped, tag = 'scoped memory for tpu_custom_call.1']
    #allocation9 [shape = 'u8[4096]{0}', space=vmem, size = 0x1000, scoped, tag = 'input window, operand 1, single buffered']
    #allocation10 [shape = 's32[1]{0}', space=sflag, size = 0x4, scoped, tag = 'scoped memory for tpu_custom_call.1']
    #allocation11 [shape = 'u8[4096]{0}', space=vmem, size = 0x1000, scoped, tag = 'input window, operand 2, single buffered']
    #allocation12 [shape = 'u8[4096]{0}', space=vmem, size = 0x1000, scoped, tag = 'input window, operand 3, single buffered']
    #allocation13 [shape = 's32[1]{0}', space=sflag, size = 0x4, scoped, tag = 'scoped memory for tpu_custom_call.1']
    #allocation14 [shape = 'u8[4096]{0}', space=vmem, size = 0x1000, scoped, tag = 'input window, operand 4, single buffered']
    #allocation15 [shape = 'u8[65536]{0}', space=vmem, size = 0x10000, scoped, tag = 'input window, operand 5, single buffered']
    #allocation16 [shape = 's32[1]{0}', space=sflag, size = 0x4, scoped, tag = 'scoped memory for tpu_custom_call.1']
    #allocation17 [shape = 'u8[65536]{0}', space=vmem, size = 0x10000, scoped, tag = 'input window, operand 6, single buffered']
    #allocation18 [shape = 'u8[4096]{0}', space=vmem, size = 0x1000, scoped, tag = 'output window, operand 0, single buffered']
    #allocation19 [shape = 'u8[4096]{0}', space=vmem, size = 0x1000, scoped, tag = 'output window, operand 1, single buffered']
    #allocation20 [shape = 's32[1]{0}', space=sflag, size = 0x4, scoped, tag = 'scoped memory for tpu_custom_call.1']
    #allocation21 [shape = 'u8[4096]{0}', space=vmem, size = 0x1000, scoped, tag = 'output window, operand 2, single buffered']
    #allocation22 [shape = 'u8[4096]{0}', space=vmem, size = 0x1000, scoped, tag = 'output window, operand 3, single buffered']
    #allocation23 [shape = 's32[1]{0}', space=sflag, size = 0x4, scoped, tag = 'scoped memory for tpu_custom_call.1']
    #allocation24 [shape = 'u8[4096]{0}', space=vmem, size = 0x1000, scoped, tag = 'output window, operand 4, single buffered']
    %17 = vsyncpa [#allocation7], 0
    %18 = vsyncpa [#allocation10], 0
    %19 = vsyncpa [#allocation13], 0
    %20 = vsyncpa [#allocation16], 0
    %21 = vsyncpa [#allocation8], 0
    %22 = vsyncpa [#allocation20], 0
    %23 = vsyncpa [#allocation23], 0
    // Predicated region
    $region2: #{tpu_custom_call.1} parent=1 // pred_check
      _
    $region3: #{tpu_custom_call.1} parent=1 // pred_check_branch
      %25 = sbr.rel (0) target = $region5
    $region4: #{tpu_custom_call.1} parent=1 // pred_region
      %s27 = ssub.s32 128, 128
      %28 = vsyncadd [#allocation7], %s27
      %s30 = sshll.u32 [#allocation6], 4
      %s31 = int_to_ptr.vmem [resolvable:$true] %s30
      %33 = dma.hbm_to_vmem [thread:$0]  %s0, 128, %s31, [#allocation7]
    $region5: #{tpu_custom_call.1} parent=1 // pred_fallthru
      _
    // Predicated region
    $region6: #{tpu_custom_call.1} parent=1 // pred_check
      _
    $region7: #{tpu_custom_call.1} parent=1 // pred_check_branch
      %35 = sbr.rel (0) target = $region9
    $region8: #{tpu_custom_call.1} parent=1 // pred_region
      %s37 = ssub.s32 128, 128
      %38 = vsyncadd [#allocation10], %s37
      %s40 = sshll.u32 [#allocation9], 4
      %s41 = int_to_ptr.vmem [resolvable:$true] %s40
      %43 = dma.hbm_to_vmem [thread:$0]  %s1, 128, %s41, [#allocation10]
    $region9: #{tpu_custom_call.1} parent=1 // pred_fallthru
      _
    // Predicated region
    $region10: #{tpu_custom_call.1} parent=1 // pred_check
      _
    $region11: #{tpu_custom_call.1} parent=1 // pred_check_branch
      %45 = sbr.rel (0) target = $region13
    $region12: #{tpu_custom_call.1} parent=1 // pred_region
      %s47 = ssub.s32 128, 128
      %48 = vsyncadd [#allocation10], %s47
      %s50 = sshll.u32 [#allocation11], 4
      %s51 = int_to_ptr.vmem [resolvable:$true] %s50
      %53 = dma.hbm_to_vmem [thread:$0]  %s2, 128, %s51, [#allocation10]
    $region13: #{tpu_custom_call.1} parent=1 // pred_fallthru
      _
    // Predicated region
    $region14: #{tpu_custom_call.1} parent=1 // pred_check
      _
    $region15: #{tpu_custom_call.1} parent=1 // pred_check_branch
      %55 = sbr.rel (0) target = $region17
    $region16: #{tpu_custom_call.1} parent=1 // pred_region
      %s57 = ssub.s32 128, 128
      %58 = vsyncadd [#allocation13], %s57
      %s60 = sshll.u32 [#allocation12], 4
      %s61 = int_to_ptr.vmem [resolvable:$true] %s60
      %63 = dma.hbm_to_vmem [thread:$0]  %s3, 128, %s61, [#allocation13]
    $region17: #{tpu_custom_call.1} parent=1 // pred_fallthru
      _
    // Predicated region
    $region18: #{tpu_custom_call.1} parent=1 // pred_check
      _
    $region19: #{tpu_custom_call.1} parent=1 // pred_check_branch
      %65 = sbr.rel (0) target = $region21
    $region20: #{tpu_custom_call.1} parent=1 // pred_region
      %s67 = ssub.s32 128, 128
      %68 = vsyncadd [#allocation13], %s67
      %s70 = sshll.u32 [#allocation14], 4
      %s71 = int_to_ptr.vmem [resolvable:$true] %s70
      %73 = dma.hbm_to_vmem [thread:$0]  %s4, 128, %s71, [#allocation13]
    $region21: #{tpu_custom_call.1} parent=1 // pred_fallthru
      _
    // Predicated region
    $region22: #{tpu_custom_call.1} parent=1 // pred_check
      _
    $region23: #{tpu_custom_call.1} parent=1 // pred_check_branch
      %75 = sbr.rel (0) target = $region25
    $region24: #{tpu_custom_call.1} parent=1 // pred_region
      %s77 = ssub.s32 2048, 2048
      %78 = vsyncadd [#allocation16], %s77
      %s79 = sshll.u32 [#allocation15], 4
      %s80 = int_to_ptr.vmem [resolvable:$true] %s79
      %85 = dma.hbm_to_vmem [thread:$0]  %s5, 2048, %s80, [#allocation16], 128, 128, 8
    $region25: #{tpu_custom_call.1} parent=1 // pred_fallthru
      _
    // Predicated region
    $region26: #{tpu_custom_call.1} parent=1 // pred_check
      _
    $region27: #{tpu_custom_call.1} parent=1 // pred_check_branch
      %87 = sbr.rel (0) target = $region29
    $region28: #{tpu_custom_call.1} parent=1 // pred_region
      %s89 = ssub.s32 2048, 2048
      %90 = vsyncadd [#allocation16], %s89
      %s91 = sshll.u32 [#allocation17], 4
      %s92 = int_to_ptr.vmem [resolvable:$true] %s91
      %97 = dma.hbm_to_vmem [thread:$0]  %s6, 2048, %s92, [#allocation16], 128, 128, 8
    $region29: #{tpu_custom_call.1} parent=1 // pred_fallthru
      _
    // Predicated region
    $region30: #{tpu_custom_call.1} parent=1 // pred_check
      _
    $region31: #{tpu_custom_call.1} parent=1 // pred_check_branch
      %99 = sbr.rel (0) target = $region33
    $region32: #{tpu_custom_call.1} parent=1 // pred_region
      %100 = dma.done [#allocation7], 128
    $region33: #{tpu_custom_call.1} parent=1 // pred_fallthru
      _
    // Predicated region
    $region34: #{tpu_custom_call.1} parent=1 // pred_check
      _
    $region35: #{tpu_custom_call.1} parent=1 // pred_check_branch
      %102 = sbr.rel (0) target = $region37
    $region36: #{tpu_custom_call.1} parent=1 // pred_region
      %103 = dma.done [#allocation10], 128
    $region37: #{tpu_custom_call.1} parent=1 // pred_fallthru
      _
    // Predicated region
    $region38: #{tpu_custom_call.1} parent=1 // pred_check
      _
    $region39: #{tpu_custom_call.1} parent=1 // pred_check_branch
      %105 = sbr.rel (0) target = $region41
    $region40: #{tpu_custom_call.1} parent=1 // pred_region
      %106 = dma.done [#allocation10], 128
    $region41: #{tpu_custom_call.1} parent=1 // pred_fallthru
      _
    // Predicated region
    $region42: #{tpu_custom_call.1} parent=1 // pred_check
      _
    $region43: #{tpu_custom_call.1} parent=1 // pred_check_branch
      %108 = sbr.rel (0) target = $region45
    $region44: #{tpu_custom_call.1} parent=1 // pred_region
      %109 = dma.done [#allocation13], 128
    $region45: #{tpu_custom_call.1} parent=1 // pred_fallthru
      _
    // Predicated region
    $region46: #{tpu_custom_call.1} parent=1 // pred_check
      _
    $region47: #{tpu_custom_call.1} parent=1 // pred_check_branch
      %111 = sbr.rel (0) target = $region49
    $region48: #{tpu_custom_call.1} parent=1 // pred_region
      %112 = dma.done [#allocation13], 128
    $region49: #{tpu_custom_call.1} parent=1 // pred_fallthru
      _
    // Predicated region
    $region50: #{tpu_custom_call.1} parent=1 // pred_check
      _
    $region51: #{tpu_custom_call.1} parent=1 // pred_check_branch
      %114 = sbr.rel (0) target = $region53
    $region52: #{tpu_custom_call.1} parent=1 // pred_region
      %115 = dma.done [#allocation16], 2048
    $region53: #{tpu_custom_call.1} parent=1 // pred_fallthru
      _
    // Predicated region
    $region54: #{tpu_custom_call.1} parent=1 // pred_check
      _
    $region55: #{tpu_custom_call.1} parent=1 // pred_check_branch
      %117 = sbr.rel (0) target = $region57
    $region56: #{tpu_custom_call.1} parent=1 // pred_region
      %118 = dma.done [#allocation16], 2048
    $region57: #{tpu_custom_call.1} parent=1 // pred_fallthru
      _
    %p119 = scmp.eq.s32.totalorder 0, 0
    // Predicated region
    $region58: #{tpu_custom_call.1} parent=1 // pred_check
      %p120 = pneg %p119
    $region59: #{tpu_custom_call.1} parent=1 // pred_check_branch
      %122 = sbr.rel (%p120) target = $region61
    $region60: #{tpu_custom_call.1} parent=1 // pred_region
      %v123 = vld [vmem:[#allocation9] sm:$0xff]
      %124 = vst [vmem:[#allocation2] sm:$0xff] %v123
      %v125 = vld [vmem:[#allocation11] sm:$0xff]
      %126 = vst [vmem:[#allocation3] sm:$0xff] %v125
      %v127 = vld [vmem:[#allocation12] sm:$0xff]
      %128 = vst [vmem:[#allocation4] sm:$0xff] %v127
      %v129 = vld [vmem:[#allocation14] sm:$0xff]
      %130 = vst [vmem:[#allocation5] sm:$0xff] %v129
    $region61: #{tpu_custom_call.1} parent=1 // pred_fallthru
      _
    %v131 = vld [vmem:[#allocation2] sm:$0xff]
    %v132 = vld [vmem:[#allocation3] sm:$0xff]
    %v133 = vld [vmem:[#allocation4] sm:$0xff]
    %v134 = vld [vmem:[#allocation5] sm:$0xff]
    %v135 = vmul.f32 %v132, 0.9
    %v136 = vmul.f32 %v133, 0.1
    %v137 = vadd.f32 %v135, %v136
    %v138 = vadd.f32 %v137, 0.0
    %v139 = vmul.f32 %v133, 0.8
    %v140 = vmul.f32 %v134, 0.99999857
    %v141 = vadd.f32 %v140, 1.4285714e-06
    %vm142 = vcmp.gt.f32.partialorder %v138, %v141
    %v143 = vsel %vm142, 1, 0
    %v144 = vcvt.s32.f32 %v143
    %v145 = vsel %vm142, 0.0, %v138
    %v146 = vadd.f32 %v141, 0.0025714287
    %v147 = vsel %vm142, %v146, %v141
    %v148 = vld [vmem:[#allocation6] sm:$0xff]
    %v149 = vld [vmem:[#allocation15] sm:$0xff]
    %v150 = vld [vmem:[#allocation15 + $0x8] sm:$0xff]
    %v151 = vld [vmem:[#allocation15 + $0x10] sm:$0xff]
    %v152 = vld [vmem:[#allocation15 + $0x18] sm:$0xff]
    %v153 = vld [vmem:[#allocation15 + $0x20] sm:$0xff]
    %v154 = vld [vmem:[#allocation15 + $0x28] sm:$0xff]
    %v155 = vld [vmem:[#allocation15 + $0x30] sm:$0xff]
    %v156 = vld [vmem:[#allocation15 + $0x38] sm:$0xff]
    %v157 = vld [vmem:[#allocation15 + $0x40] sm:$0xff]
    %v158 = vld [vmem:[#allocation15 + $0x48] sm:$0xff]
    %v159 = vld [vmem:[#allocation15 + $0x50] sm:$0xff]
    %v160 = vld [vmem:[#allocation15 + $0x58] sm:$0xff]
    %v161 = vld [vmem:[#allocation15 + $0x60] sm:$0xff]
    %v162 = vld [vmem:[#allocation15 + $0x68] sm:$0xff]
    %v163 = vld [vmem:[#allocation15 + $0x70] sm:$0xff]
    %v164 = vld [vmem:[#allocation15 + $0x78] sm:$0xff]
    %v165 = vld [vmem:[#allocation17] sm:$0xff]
    %v166 = vld [vmem:[#allocation17 + $0x8] sm:$0xff]
    %v167 = vld [vmem:[#allocation17 + $0x10] sm:$0xff]
    %v168 = vld [vmem:[#allocation17 + $0x18] sm:$0xff]
    %v169 = vld [vmem:[#allocation17 + $0x20] sm:$0xff]
    %v170 = vld [vmem:[#allocation17 + $0x28] sm:$0xff]
    %v171 = vld [vmem:[#allocation17 + $0x30] sm:$0xff]
    %v172 = vld [vmem:[#allocation17 + $0x38] sm:$0xff]
    %v173 = vld [vmem:[#allocation17 + $0x40] sm:$0xff]
    %v174 = vld [vmem:[#allocation17 + $0x48] sm:$0xff]
    %v175 = vld [vmem:[#allocation17 + $0x50] sm:$0xff]
    %v176 = vld [vmem:[#allocation17 + $0x58] sm:$0xff]
    %v177 = vld [vmem:[#allocation17 + $0x60] sm:$0xff]
    %v178 = vld [vmem:[#allocation17 + $0x68] sm:$0xff]
    %v179 = vld [vmem:[#allocation17 + $0x70] sm:$0xff]
    %v180 = vld [vmem:[#allocation17 + $0x78] sm:$0xff]
    %181 = vmatprep.subr.mxu0 0.0
    %182 = vmatpush1.msra.mxu0 %v180
    %183 = vmatprep.subr.mxu0 0.0
    %184 = vmatpush1.msra.mxu0 %v179
    %185 = vmatprep.subr.mxu0 0.0
    %186 = vmatpush1.msra.mxu0 %v178
    %187 = vmatprep.subr.mxu0 0.0
    %188 = vmatpush1.msra.mxu0 %v177
    %189 = vmatprep.subr.mxu0 0.0
    %190 = vmatpush1.msra.mxu0 %v176
    %191 = vmatprep.subr.mxu0 0.0
    %192 = vmatpush1.msra.mxu0 %v175
    %193 = vmatprep.subr.mxu0 0.0
    %194 = vmatpush1.msra.mxu0 %v174
    %195 = vmatprep.subr.mxu0 0.0
    %196 = vmatpush1.msra.mxu0 %v173
    %197 = vmatprep.subr.mxu0 0.0
    %198 = vmatpush1.msra.mxu0 %v172
    %199 = vmatprep.subr.mxu0 0.0
    %200 = vmatpush1.msra.mxu0 %v171
    %201 = vmatprep.subr.mxu0 0.0
    %202 = vmatpush1.msra.mxu0 %v170
    %203 = vmatprep.subr.mxu0 0.0
    %204 = vmatpush1.msra.mxu0 %v169
    %205 = vmatprep.subr.mxu0 0.0
    %206 = vmatpush1.msra.mxu0 %v168
    %207 = vmatprep.subr.mxu0 0.0
    %208 = vmatpush1.msra.mxu0 %v167
    %209 = vmatprep.subr.mxu0 0.0
    %210 = vmatpush1.msra.mxu0 %v166
    %211 = vmatprep.subr.mxu0 0.0
    %212 = vmatpush1.msra.mxu0 %v165
    %213 = vmatprep.subr.mxu0 0.0
    %214 = vmatpush2.msra.mxu0 0.0
    %215 = vmatprep.subr.mxu0 0.0
    %216 = vmatpush2.msra.mxu0 0.0
    %217 = vmatprep.subr.mxu0 0.0
    %218 = vmatpush2.msra.mxu0 0.0
    %219 = vmatprep.subr.mxu0 0.0
    %220 = vmatpush2.msra.mxu0 0.0
    %221 = vmatprep.subr.mxu0 0.0
    %222 = vmatpush2.msra.mxu0 0.0
    %223 = vmatprep.subr.mxu0 0.0
    %224 = vmatpush2.msra.mxu0 0.0
    %225 = vmatprep.subr.mxu0 0.0
    %226 = vmatpush2.msra.mxu0 0.0
    %227 = vmatprep.subr.mxu0 0.0
    %228 = vmatpush2.msra.mxu0 0.0
    %229 = vmatprep.subr.mxu0 0.0
    %230 = vmatpush2.msra.mxu0 0.0
    %231 = vmatprep.subr.mxu0 0.0
    %232 = vmatpush2.msra.mxu0 0.0
    %233 = vmatprep.subr.mxu0 0.0
    %234 = vmatpush2.msra.mxu0 0.0
    %235 = vmatprep.subr.mxu0 0.0
    %236 = vmatpush2.msra.mxu0 0.0
    %237 = vmatprep.subr.mxu0 0.0
    %238 = vmatpush2.msra.mxu0 0.0
    %239 = vmatprep.subr.mxu0 0.0
    %240 = vmatpush2.msra.mxu0 0.0
    %241 = vmatprep.subr.mxu0 0.0
    %242 = vmatpush2.msra.mxu0 0.0
    %243 = vmatprep.subr.mxu0 0.0
    %244 = vmatpush2.msra.mxu0 0.0
    %245 = vmatprep.mubr.f32.mxu0 0.0
    %246 = vmatmul.mubr.f32.gmra.mxu0 %v131
    %v247 = vpop.f32.mrf.mxu0
    %v248 = vadd.f32 0.0, %v247
    %v249 = vpop.f32.mrf.mxu0
    %250 = vdwg.mxu0
    %251 = vmatprep.subr.mxu0 0.0
    %252 = vmatpush1.msra.mxu0 %v164
    %253 = vmatprep.subr.mxu0 0.0
    %254 = vmatpush1.msra.mxu0 %v163
    %255 = vmatprep.subr.mxu0 0.0
    %256 = vmatpush1.msra.mxu0 %v162
    %257 = vmatprep.subr.mxu0 0.0
    %258 = vmatpush1.msra.mxu0 %v161
    %259 = vmatprep.subr.mxu0 0.0
    %260 = vmatpush1.msra.mxu0 %v160
    %261 = vmatprep.subr.mxu0 0.0
    %262 = vmatpush1.msra.mxu0 %v159
    %263 = vmatprep.subr.mxu0 0.0
    %264 = vmatpush1.msra.mxu0 %v158
    %265 = vmatprep.subr.mxu0 0.0
    %266 = vmatpush1.msra.mxu0 %v157
    %267 = vmatprep.subr.mxu0 0.0
    %268 = vmatpush1.msra.mxu0 %v156
    %269 = vmatprep.subr.mxu0 0.0
    %270 = vmatpush1.msra.mxu0 %v155
    %271 = vmatprep.subr.mxu0 0.0
    %272 = vmatpush1.msra.mxu0 %v154
    %273 = vmatprep.subr.mxu0 0.0
    %274 = vmatpush1.msra.mxu0 %v153
    %275 = vmatprep.subr.mxu0 0.0
    %276 = vmatpush1.msra.mxu0 %v152
    %277 = vmatprep.subr.mxu0 0.0
    %278 = vmatpush1.msra.mxu0 %v151
    %279 = vmatprep.subr.mxu0 0.0
    %280 = vmatpush1.msra.mxu0 %v150
    %281 = vmatprep.subr.mxu0 0.0
    %282 = vmatpush1.msra.mxu0 %v149
    %283 = vmatprep.subr.mxu0 0.0
    %284 = vmatpush2.msra.mxu0 0.0
    %285 = vmatprep.subr.mxu0 0.0
    %286 = vmatpush2.msra.mxu0 0.0
    %287 = vmatprep.subr.mxu0 0.0
    %288 = vmatpush2.msra.mxu0 0.0
    %289 = vmatprep.subr.mxu0 0.0
    %290 = vmatpush2.msra.mxu0 0.0
    %291 = vmatprep.subr.mxu0 0.0
    %292 = vmatpush2.msra.mxu0 0.0
    %293 = vmatprep.subr.mxu0 0.0
    %294 = vmatpush2.msra.mxu0 0.0
    %295 = vmatprep.subr.mxu0 0.0
    %296 = vmatpush2.msra.mxu0 0.0
    %297 = vmatprep.subr.mxu0 0.0
    %298 = vmatpush2.msra.mxu0 0.0
    %299 = vmatprep.subr.mxu0 0.0
    %300 = vmatpush2.msra.mxu0 0.0
    %301 = vmatprep.subr.mxu0 0.0
    %302 = vmatpush2.msra.mxu0 0.0
    %303 = vmatprep.subr.mxu0 0.0
    %304 = vmatpush2.msra.mxu0 0.0
    %305 = vmatprep.subr.mxu0 0.0
    %306 = vmatpush2.msra.mxu0 0.0
    %307 = vmatprep.subr.mxu0 0.0
    %308 = vmatpush2.msra.mxu0 0.0
    %309 = vmatprep.subr.mxu0 0.0
    %310 = vmatpush2.msra.mxu0 0.0
    %311 = vmatprep.subr.mxu0 0.0
    %312 = vmatpush2.msra.mxu0 0.0
    %313 = vmatprep.subr.mxu0 0.0
    %314 = vmatpush2.msra.mxu0 0.0
    %315 = vmatprep.mubr.f32.mxu0 0.0
    %316 = vmatmul.mubr.f32.gmra.mxu0 %v148
    %v317 = vpop.f32.mrf.mxu0
    %v318 = vadd.f32 %v248, %v317
    %v319 = vpop.f32.mrf.mxu0
    %320 = vdwg.mxu0
    %v321 = vadd.f32 %v139, %v318
    %322 = vst [vmem:[#allocation18] sm:$0xff] %v144
    %323 = vst [vmem:[#allocation2] sm:$0xff] %v144
    %324 = vst [vmem:[#allocation3] sm:$0xff] %v145
    %325 = vst [vmem:[#allocation4] sm:$0xff] %v321
    %326 = vst [vmem:[#allocation5] sm:$0xff] %v147
    // Predicated region
    $region62: #{tpu_custom_call.1} parent=1 // pred_check
      %p327 = pneg %p119
    $region63: #{tpu_custom_call.1} parent=1 // pred_check_branch
      %329 = sbr.rel (%p327) target = $region65
    $region64: #{tpu_custom_call.1} parent=1 // pred_region
      %330 = vst [vmem:[#allocation19] sm:$0xff] %v144
      %331 = vst [vmem:[#allocation21] sm:$0xff] %v145
      %332 = vst [vmem:[#allocation22] sm:$0xff] %v321
      %333 = vst [vmem:[#allocation24] sm:$0xff] %v147
    $region65: #{tpu_custom_call.1} parent=1 // pred_fallthru
      _
    // Predicated region
    $region66: #{tpu_custom_call.1} parent=1 // pred_check
      _
    $region67: #{tpu_custom_call.1} parent=1 // pred_check_branch
      %335 = sbr.rel (0) target = $region69
    $region68: #{tpu_custom_call.1} parent=1 // pred_region
      %s337 = ssub.s32 128, 128
      %338 = vsyncadd [#allocation8], %s337
      %s340 = sshll.u32 [#allocation18], 4
      %s341 = int_to_ptr.vmem [resolvable:$true] %s340
      %343 = dma.vmem_to_hbm [thread:$0]  %s341, 128, %s7, [#allocation8]
    $region69: #{tpu_custom_call.1} parent=1 // pred_fallthru
      _
    // Predicated region
    $region70: #{tpu_custom_call.1} parent=1 // pred_check
      _
    $region71: #{tpu_custom_call.1} parent=1 // pred_check_branch
      %345 = sbr.rel (0) target = $region73
    $region72: #{tpu_custom_call.1} parent=1 // pred_region
      %s347 = ssub.s32 128, 128
      %348 = vsyncadd [#allocation20], %s347
      %s350 = sshll.u32 [#allocation19], 4
      %s351 = int_to_ptr.vmem [resolvable:$true] %s350
      %353 = dma.vmem_to_hbm [thread:$0]  %s351, 128, %s8, [#allocation20]
    $region73: #{tpu_custom_call.1} parent=1 // pred_fallthru
      _
    // Predicated region
    $region74: #{tpu_custom_call.1} parent=1 // pred_check
      _
    $region75: #{tpu_custom_call.1} parent=1 // pred_check_branch
      %355 = sbr.rel (0) target = $region77
    $region76: #{tpu_custom_call.1} parent=1 // pred_region
      %s357 = ssub.s32 128, 128
      %358 = vsyncadd [#allocation20], %s357
      %s360 = sshll.u32 [#allocation21], 4
      %s361 = int_to_ptr.vmem [resolvable:$true] %s360
      %363 = dma.vmem_to_hbm [thread:$0]  %s361, 128, %s9, [#allocation20]
    $region77: #{tpu_custom_call.1} parent=1 // pred_fallthru
      _
    // Predicated region
    $region78: #{tpu_custom_call.1} parent=1 // pred_check
      _
    $region79: #{tpu_custom_call.1} parent=1 // pred_check_branch
      %365 = sbr.rel (0) target = $region81
    $region80: #{tpu_custom_call.1} parent=1 // pred_region
      %s367 = ssub.s32 128, 128
      %368 = vsyncadd [#allocation23], %s367
      %s370 = sshll.u32 [#allocation22], 4
      %s371 = int_to_ptr.vmem [resolvable:$true] %s370
      %373 = dma.vmem_to_hbm [thread:$0]  %s371, 128, %s10, [#allocation23]
    $region81: #{tpu_custom_call.1} parent=1 // pred_fallthru
      _
    // Predicated region
    $region82: #{tpu_custom_call.1} parent=1 // pred_check
      _
    $region83: #{tpu_custom_call.1} parent=1 // pred_check_branch
      %375 = sbr.rel (0) target = $region85
    $region84: #{tpu_custom_call.1} parent=1 // pred_region
      %s377 = ssub.s32 128, 128
      %378 = vsyncadd [#allocation23], %s377
      %s380 = sshll.u32 [#allocation24], 4
      %s381 = int_to_ptr.vmem [resolvable:$true] %s380
      %383 = dma.vmem_to_hbm [thread:$0]  %s381, 128, %s11, [#allocation23]
    $region85: #{tpu_custom_call.1} parent=1 // pred_fallthru
      _
    // Predicated region
    $region86: #{tpu_custom_call.1} parent=1 // pred_check
      _
    $region87: #{tpu_custom_call.1} parent=1 // pred_check_branch
      %385 = sbr.rel (0) target = $region89
    $region88: #{tpu_custom_call.1} parent=1 // pred_region
      %386 = dma.done [#allocation8], 128
    $region89: #{tpu_custom_call.1} parent=1 // pred_fallthru
      _
    // Predicated region
    $region90: #{tpu_custom_call.1} parent=1 // pred_check
      _
    $region91: #{tpu_custom_call.1} parent=1 // pred_check_branch
      %388 = sbr.rel (0) target = $region93
    $region92: #{tpu_custom_call.1} parent=1 // pred_region
      %389 = dma.done [#allocation20], 128
    $region93: #{tpu_custom_call.1} parent=1 // pred_fallthru
      _
    // Predicated region
    $region94: #{tpu_custom_call.1} parent=1 // pred_check
      _
    $region95: #{tpu_custom_call.1} parent=1 // pred_check_branch
      %391 = sbr.rel (0) target = $region97
    $region96: #{tpu_custom_call.1} parent=1 // pred_region
      %392 = dma.done [#allocation20], 128
    $region97: #{tpu_custom_call.1} parent=1 // pred_fallthru
      _
    // Predicated region
    $region98: #{tpu_custom_call.1} parent=1 // pred_check
      _
    $region99: #{tpu_custom_call.1} parent=1 // pred_check_branch
      %394 = sbr.rel (0) target = $region101
    $region100: #{tpu_custom_call.1} parent=1 // pred_region
      %395 = dma.done [#allocation23], 128
    $region101: #{tpu_custom_call.1} parent=1 // pred_fallthru
      _
    // Predicated region
    $region102: #{tpu_custom_call.1} parent=1 // pred_check
      _
    $region103: #{tpu_custom_call.1} parent=1 // pred_check_branch
      %397 = sbr.rel (0) target = $region105
    $region104: #{tpu_custom_call.1} parent=1 // pred_region
      %398 = dma.done [#allocation23], 128
    $region105: #{tpu_custom_call.1} parent=1 // pred_fallthru
      _
    %399 = vsyncpa [#allocation7], 1
    %400 = vsyncpa [#allocation10], 1
    %401 = vsyncpa [#allocation13], 1
    %402 = vsyncpa [#allocation16], 1
    %403 = vsyncpa [#allocation8], 1
    %404 = vsyncpa [#allocation20], 1
    %405 = vsyncpa [#allocation23], 1

</llo_original>
